<compile_context>
chip_gen: v7x
topology: tpu7x:2x2x1
jax: 0.10.0
libtpu: 0.0.40
codegen_flags: <defaults>
</compile_context>

<pallas_src>
import functools

import jax
import jax.numpy as jnp
import numpy as np
from jax.experimental import pallas as pl
from jax.experimental.pallas import tpu as pltpu


# --------------------------------------------------------------------------
# Kernel
# --------------------------------------------------------------------------
def _se_time_kernel(x_ref, w1r_ref, w1i_ref, b1_ref,
                    w2r_ref, w2i_ref, b2r_ref, b2i_ref, o_ref):
    # x_ref: (R, T, L) f32 with lanes interleaved [re, im, re, im, ...].
    lane = jax.lax.broadcasted_iota(jnp.int32, x_ref.shape, 2)
    is_imag = (lane & 1) == 1

    # --- squeeze: masked spatial sums (1/HW folded into w1r/w1i) ---
    x = x_ref[...]
    sum_real = jnp.sum(jnp.where(is_imag, 0.0, x), axis=-1)       # (R, T)
    sum_imag = jnp.sum(jnp.where(is_imag, x, 0.0), axis=-1)       # (R, T)

    # --- excitation: fc2(fc1([real_mean ; imag_mean])), sigmoid, no ReLU ---
    h = (jnp.dot(sum_real, w1r_ref[...], preferred_element_type=jnp.float32)
         + jnp.dot(sum_imag, w1i_ref[...], preferred_element_type=jnp.float32)
         + b1_ref[...])                                           # (R, 2b)
    s_real = jax.nn.sigmoid(
        jnp.dot(h, w2r_ref[...], preferred_element_type=jnp.float32)
        + b2r_ref[...])                                           # (R, T)
    s_imag = jax.nn.sigmoid(
        jnp.dot(h, w2i_ref[...], preferred_element_type=jnp.float32)
        + b2i_ref[...])                                           # (R, T)

    # --- rescale: per-lane select of real/imag scale; re-read x from VMEM ---
    scale = jnp.where(is_imag, s_imag[:, :, None], s_real[:, :, None])
    o_ref[...] = x_ref[...] * scale


# --------------------------------------------------------------------------
# Sizing helpers
# --------------------------------------------------------------------------
def _vmem_limit_bytes():
    """Per-generation VMEM limit: ~40 MiB on v7x (64 MiB), ~80 MiB on v5e/v6e."""
    cap = None
    try:
        info = pltpu.get_tpu_info()
        cap = getattr(info, "vmem_capacity_bytes", None)
    except Exception:
        cap = None
    if not cap:
        cap = 64 << 20          # conservative: v7x per-core VMEM
    return int(max(16 << 20, min(cap * 5 // 8, 96 << 20)))


def _choose_row_block(bc, row_bytes, vmem_limit):
    """Rows per grid step.

    Budget ~8 block-sized buffers per step: 2 streams x 2 pipeline buffers
    plus in-kernel temporaries (masks / masked copies / scale).
    """
    r = max(1, vmem_limit // (8 * row_bytes))
    r = min(r, 1024, bc)
    # >=4 grid steps when possible (megacore sharding + prefetch/writeback
    # overlap); >=2 whenever there is any work to split.
    if bc >= 4:
        r = min(r, -(-bc // 4))
    elif bc >= 2:
        r = min(r, -(-bc // 2))
    return max(1, int(r))


# --------------------------------------------------------------------------
# Complex <-> interleaved-f32 view helpers
# --------------------------------------------------------------------------
@functools.lru_cache(maxsize=1)
def _complex_bitcast_supported():
    try:
        f = jax.lax.bitcast_convert_type(jnp.zeros((4,), jnp.complex64),
                                         jnp.float32)
        c = jax.lax.bitcast_convert_type(jnp.zeros((4, 2), jnp.float32),
                                         jnp.complex64)
        jax.block_until_ready((f, c))
        return True
    except Exception:
        return False


def _complex_to_interleaved(x):
    """complex64 (..., H, W) -> f32 (..., H, W, 2) with (re, im) last."""
    if _complex_bitcast_supported():
        return jax.lax.bitcast_convert_type(x, jnp.float32)
    return jnp.stack([jnp.real(x), jnp.imag(x)], axis=-1).astype(jnp.float32)


def _interleaved_to_complex(y):
    """f32 (..., 2) -> complex64 (...)."""
    if _complex_bitcast_supported():
        return jax.lax.bitcast_convert_type(y, jnp.complex64)
    return jax.lax.complex(y[..., 0], y[..., 1])


# --------------------------------------------------------------------------
# Wrapper
# --------------------------------------------------------------------------
def complex_se_time_layer(x, w1, b1, w2, b2, time_size):
    """x: complex64 (B, C, T, H, W). Returns complex64 of the same shape."""
    B, C, T, H, W = x.shape
    assert T == time_size
    HW = H * W
    BC = B * C
    L = 2 * HW                                   # interleaved lane width

    # ---- interleaved f32 view of the activation ----
    xs = _complex_to_interleaved(x).reshape(BC, T, L)

    # Lane density guard: pad lanes to a multiple of 128 (zeros do not affect
    # the masked sums; padded outputs are sliced off).
    L_pad = -(-L // 128) * 128
    if L_pad != L:
        xs = jnp.pad(xs, ((0, 0), (0, 0), (0, L_pad - L)))

    # ---- weight prep: transpose, split real/imag halves, fold 1/HW ----
    w1f = w1.astype(jnp.float32) * (1.0 / float(HW))     # (2b, 2T), mean folded
    w1r = w1f[:, :T].T                                   # (T, 2b)
    w1i = w1f[:, T:].T                                   # (T, 2b)
    b1r = b1.reshape(1, -1).astype(jnp.float32)          # (1, 2b)
    w2f = w2.astype(jnp.float32)                         # (2T, 2b)
    w2r = w2f[:T, :].T                                   # (2b, T)
    w2i = w2f[T:, :].T                                   # (2b, T)
    b2r = b2[:T].reshape(1, -1).astype(jnp.float32)      # (1, T)
    b2i = b2[T:].reshape(1, -1).astype(jnp.float32)      # (1, T)

    # ---- tiling ----
    vmem_limit = _vmem_limit_bytes()
    row_bytes = T * L_pad * 4
    R = _choose_row_block(BC, row_bytes, vmem_limit)
    grid = (pl.cdiv(BC, R),)

    out = pl.pallas_call(
        _se_time_kernel,
        out_shape=jax.ShapeDtypeStruct((BC, T, L_pad), jnp.float32),
        grid_spec=pltpu.PrefetchScalarGridSpec(
            num_scalar_prefetch=0,
            grid=grid,
            in_specs=[
                pl.BlockSpec((R, T, L_pad), lambda i: (i, 0, 0)),
                pl.BlockSpec(w1r.shape, lambda i: (0, 0)),
                pl.BlockSpec(w1i.shape, lambda i: (0, 0)),
                pl.BlockSpec(b1r.shape, lambda i: (0, 0)),
                pl.BlockSpec(w2r.shape, lambda i: (0, 0)),
                pl.BlockSpec(w2i.shape, lambda i: (0, 0)),
                pl.BlockSpec(b2r.shape, lambda i: (0, 0)),
                pl.BlockSpec(b2i.shape, lambda i: (0, 0)),
            ],
            out_specs=pl.BlockSpec((R, T, L_pad), lambda i: (i, 0, 0)),
        ),
        compiler_params=pltpu.CompilerParams(
            dimension_semantics=("parallel",),
            vmem_limit_bytes=vmem_limit,
        ),
    )(xs, w1r, w1i, b1r, w2r, w2i, b2r, b2i)

    if L_pad != L:
        out = out[:, :, :L]
    out = out.reshape(B, C, T, H, W, 2)
    return _interleaved_to_complex(out)


# --------------------------------------------------------------------------
# Pure-JAX reference (transcription of the PyTorch forward)
# --------------------------------------------------------------------------
def reference(x, w1, b1, w2, b2, time_size):
    real = jnp.real(x).mean(axis=(-2, -1))                 # (B, C, T)
    imag = jnp.imag(x).mean(axis=(-2, -1))                 # (B, C, T)
    x_cat = jnp.concatenate([real, imag], axis=-1)         # (B, C, 2T)
    B, C, _ = x_cat.shape
    flat = x_cat.reshape(B * C, -1)
    h = flat @ w1.T + b1
    o = h @ w2.T + b2
    s = jax.nn.sigmoid(o).reshape(B, C, 2 * time_size, 1, 1)
    sr = s[:, :, :time_size]
    si = s[:, :, time_size:]
    return jax.lax.complex(jnp.real(x) * sr, jnp.imag(x) * si)


if __name__ == "__main__":
    B, C, T, H, W = 2, 4, 8, 16, 16          # time_size = 8
    bottle = 2

    key = jax.random.PRNGKey(0)
    k_xr, k_xi, k_w1, k_b1, k_w2, k_b2 = jax.random.split(key, 6)

    x_real = jax.random.normal(k_xr, (B, C, T, H, W), dtype=jnp.float32)
    x_imag = jax.random.normal(k_xi, (B, C, T, H, W), dtype=jnp.float32)
    x = jax.lax.complex(x_real, x_imag)

    # nn.Linear-shaped parameters: w1 (2b, 2T), b1 (2b,), w2 (2T, 2b), b2 (2T,)
    w1 = 0.1 * jax.random.normal(k_w1, (bottle * 2, T * 2), dtype=jnp.float32)
    b1 = 0.1 * jax.random.normal(k_b1, (bottle * 2,), dtype=jnp.float32)
    w2 = 0.1 * jax.random.normal(k_w2, (T * 2, bottle * 2), dtype=jnp.float32)
    b2 = 0.1 * jax.random.normal(k_b2, (T * 2,), dtype=jnp.float32)

    out = jax.block_until_ready(
        complex_se_time_layer(x, w1, b1, w2, b2, time_size=T))
    ref = jax.block_until_ready(reference(x, w1, b1, w2, b2, time_size=T))

    np.testing.assert_allclose(np.asarray(jnp.real(out)),
                               np.asarray(jnp.real(ref)), rtol=1e-5, atol=1e-5)
    np.testing.assert_allclose(np.asarray(jnp.imag(out)),
                               np.asarray(jnp.imag(ref)), rtol=1e-5, atol=1e-5)

    print("KERNEL_OK")
</pallas_src>

<mosaic_0001>
module attributes {stable_mosaic.version = 11 : i64} {
  func.func @_se_time_kernel(%arg0: i32, %arg1: memref<2x8x512xf32, #tpu.memory_space<vmem>>, %arg2: memref<8x4xf32, #tpu.memory_space<vmem>>, %arg3: memref<8x4xf32, #tpu.memory_space<vmem>>, %arg4: memref<1x4xf32, #tpu.memory_space<vmem>>, %arg5: memref<4x8xf32, #tpu.memory_space<vmem>>, %arg6: memref<4x8xf32, #tpu.memory_space<vmem>>, %arg7: memref<1x8xf32, #tpu.memory_space<vmem>>, %arg8: memref<1x8xf32, #tpu.memory_space<vmem>>, %arg9: memref<2x8x512xf32, #tpu.memory_space<vmem>>) attributes {dimension_semantics = [#tpu.dimension_semantics<parallel>], iteration_bounds = array<i64: 4>, scalar_prefetch = 0 : i64, scratch_operands = 0 : i64, tpu.core_type = #tpu.core_type<tc>, window_params = [{transform_indices = @transform_0, window_bounds = array<i64: 2, 8, 512>}, {pipeline_mode = #tpu.pipeline_mode<synchronous>, transform_indices = @transform_1, window_bounds = array<i64: 8, 4>}, {pipeline_mode = #tpu.pipeline_mode<synchronous>, transform_indices = @transform_2, window_bounds = array<i64: 8, 4>}, {pipeline_mode = #tpu.pipeline_mode<synchronous>, transform_indices = @transform_3, window_bounds = array<i64: 1, 4>}, {pipeline_mode = #tpu.pipeline_mode<synchronous>, transform_indices = @transform_4, window_bounds = array<i64: 4, 8>}, {pipeline_mode = #tpu.pipeline_mode<synchronous>, transform_indices = @transform_5, window_bounds = array<i64: 4, 8>}, {pipeline_mode = #tpu.pipeline_mode<synchronous>, transform_indices = @transform_6, window_bounds = array<i64: 1, 8>}, {pipeline_mode = #tpu.pipeline_mode<synchronous>, transform_indices = @transform_7, window_bounds = array<i64: 1, 8>}, {transform_indices = @transform_8, window_bounds = array<i64: 2, 8, 512>}]} {
    %0 = tpu.iota {dimensions = array<i32: 2>} : vector<2x8x512xi32>
    %c1_i32 = arith.constant 1 : i32
    %1 = vector.broadcast %c1_i32 : i32 to vector<2x8x512xi32>
    %2 = arith.andi %0, %1 : vector<2x8x512xi32>
    %c1_i32_0 = arith.constant 1 : i32
    %3 = vector.broadcast %c1_i32_0 : i32 to vector<2x8x512xi32>
    %4 = arith.cmpi eq, %2, %3 : vector<2x8x512xi32>
    %c0 = arith.constant 0 : index
    %c0_1 = arith.constant 0 : index
    %c0_2 = arith.constant 0 : index
    %5 = vector.load %arg1[%c0, %c0_1, %c0_2] : memref<2x8x512xf32, #tpu.memory_space<vmem>>, vector<2x8x512xf32>
    %cst = arith.constant 0.000000e+00 : f32
    %6 = vector.broadcast %cst : f32 to vector<2x8x512xf32>
    %7 = arith.select %4, %6, %5 : vector<2x8x512xi1>, vector<2x8x512xf32>
    %cst_3 = arith.constant dense<0.000000e+00> : vector<2x8xf32>
    %8 = vector.multi_reduction <add>, %7, %cst_3 [2] : vector<2x8x512xf32> to vector<2x8xf32>
    %cst_4 = arith.constant 0.000000e+00 : f32
    %9 = vector.broadcast %cst_4 : f32 to vector<2x8x512xf32>
    %10 = arith.select %4, %5, %9 : vector<2x8x512xi1>, vector<2x8x512xf32>
    %cst_5 = arith.constant dense<0.000000e+00> : vector<2x8xf32>
    %11 = vector.multi_reduction <add>, %10, %cst_5 [2] : vector<2x8x512xf32> to vector<2x8xf32>
    %c0_6 = arith.constant 0 : index
    %c0_7 = arith.constant 0 : index
    %12 = vector.load %arg2[%c0_6, %c0_7] : memref<8x4xf32, #tpu.memory_space<vmem>>, vector<8x4xf32>
    %cst_8 = arith.constant dense<0.000000e+00> : vector<2x4xf32>
    %13 = tpu.matmul %8, %12, %cst_8 {dimension_numbers = #tpu.dot_dimension_numbers<[1], [0], [0], [1], [0, 0, 1, 1], [], []>} : vector<2x8xf32>, vector<8x4xf32>, vector<2x4xf32> -> vector<2x4xf32>
    %c0_9 = arith.constant 0 : index
    %c0_10 = arith.constant 0 : index
    %14 = vector.load %arg3[%c0_9, %c0_10] : memref<8x4xf32, #tpu.memory_space<vmem>>, vector<8x4xf32>
    %cst_11 = arith.constant dense<0.000000e+00> : vector<2x4xf32>
    %15 = tpu.matmul %11, %14, %cst_11 {dimension_numbers = #tpu.dot_dimension_numbers<[1], [0], [0], [1], [0, 0, 1, 1], [], []>} : vector<2x8xf32>, vector<8x4xf32>, vector<2x4xf32> -> vector<2x4xf32>
    %16 = arith.addf %13, %15 : vector<2x4xf32>
    %c0_12 = arith.constant 0 : index
    %c0_13 = arith.constant 0 : index
    %17 = vector.load %arg4[%c0_12, %c0_13] : memref<1x4xf32, #tpu.memory_space<vmem>>, vector<1x4xf32>
    %18 = vector.broadcast %17 : vector<1x4xf32> to vector<2x4xf32>
    %19 = arith.addf %16, %18 : vector<2x4xf32>
    %c0_14 = arith.constant 0 : index
    %c0_15 = arith.constant 0 : index
    %20 = vector.load %arg5[%c0_14, %c0_15] : memref<4x8xf32, #tpu.memory_space<vmem>>, vector<4x8xf32>
    %cst_16 = arith.constant dense<0.000000e+00> : vector<2x8xf32>
    %21 = tpu.matmul %19, %20, %cst_16 {dimension_numbers = #tpu.dot_dimension_numbers<[1], [0], [0], [1], [0, 0, 1, 1], [], []>} : vector<2x4xf32>, vector<4x8xf32>, vector<2x8xf32> -> vector<2x8xf32>
    %c0_17 = arith.constant 0 : index
    %c0_18 = arith.constant 0 : index
    %22 = vector.load %arg7[%c0_17, %c0_18] : memref<1x8xf32, #tpu.memory_space<vmem>>, vector<1x8xf32>
    %23 = vector.broadcast %22 : vector<1x8xf32> to vector<2x8xf32>
    %24 = arith.addf %21, %23 : vector<2x8xf32>
    %25 = arith.negf %24 : vector<2x8xf32>
    %26 = math.exp %25 : vector<2x8xf32>
    %cst_19 = arith.constant 1.000000e+00 : f32
    %27 = vector.broadcast %cst_19 : f32 to vector<2x8xf32>
    %28 = arith.addf %27, %26 : vector<2x8xf32>
    %29 = arith.divf %27, %28 : vector<2x8xf32>
    %c0_20 = arith.constant 0 : index
    %c0_21 = arith.constant 0 : index
    %30 = vector.load %arg6[%c0_20, %c0_21] : memref<4x8xf32, #tpu.memory_space<vmem>>, vector<4x8xf32>
    %cst_22 = arith.constant dense<0.000000e+00> : vector<2x8xf32>
    %31 = tpu.matmul %19, %30, %cst_22 {dimension_numbers = #tpu.dot_dimension_numbers<[1], [0], [0], [1], [0, 0, 1, 1], [], []>} : vector<2x4xf32>, vector<4x8xf32>, vector<2x8xf32> -> vector<2x8xf32>
    %c0_23 = arith.constant 0 : index
    %c0_24 = arith.constant 0 : index
    %32 = vector.load %arg8[%c0_23, %c0_24] : memref<1x8xf32, #tpu.memory_space<vmem>>, vector<1x8xf32>
    %33 = vector.broadcast %32 : vector<1x8xf32> to vector<2x8xf32>
    %34 = arith.addf %31, %33 : vector<2x8xf32>
    %35 = arith.negf %34 : vector<2x8xf32>
    %36 = math.exp %35 : vector<2x8xf32>
    %cst_25 = arith.constant 1.000000e+00 : f32
    %37 = vector.broadcast %cst_25 : f32 to vector<2x8xf32>
    %38 = arith.addf %37, %36 : vector<2x8xf32>
    %39 = arith.divf %37, %38 : vector<2x8xf32>
    %40 = vector.shape_cast %39 : vector<2x8xf32> to vector<2x8x1xf32>
    %41 = vector.shape_cast %29 : vector<2x8xf32> to vector<2x8x1xf32>
    %42 = vector.shape_cast %40 : vector<2x8x1xf32> to vector<2x8x1xf32>
    %43 = vector.broadcast %42 : vector<2x8x1xf32> to vector<2x8x512xf32>
    %44 = vector.shape_cast %41 : vector<2x8x1xf32> to vector<2x8x1xf32>
    %45 = vector.broadcast %44 : vector<2x8x1xf32> to vector<2x8x512xf32>
    %46 = arith.select %4, %43, %45 : vector<2x8x512xi1>, vector<2x8x512xf32>
    %c0_26 = arith.constant 0 : index
    %c0_27 = arith.constant 0 : index
    %c0_28 = arith.constant 0 : index
    %47 = vector.load %arg1[%c0_26, %c0_27, %c0_28] : memref<2x8x512xf32, #tpu.memory_space<vmem>>, vector<2x8x512xf32>
    %48 = arith.mulf %47, %46 : vector<2x8x512xf32>
    %c0_29 = arith.constant 0 : index
    %c0_30 = arith.constant 0 : index
    %c0_31 = arith.constant 0 : index
    %49 = vector.load %arg9[%c0_29, %c0_30, %c0_31] : memref<2x8x512xf32, #tpu.memory_space<vmem>>, vector<2x8x512xf32>
    tpu.vector_store %arg9[%c0_29, %c0_30, %c0_31], %48 {strides = array<i32>} : memref<2x8x512xf32, #tpu.memory_space<vmem>>, vector<2x8x512xf32>,
    return
  }
  func.func @transform_0(%arg0: i32) -> (i32, i32, i32) {
    %c0_i32 = arith.constant 0 : i32
    %c0_i32_0 = arith.constant 0 : i32
    %c0_i32_1 = arith.constant 0 : i32
    return %arg0, %c0_i32, %c0_i32_0 : i32, i32, i32
  }
  func.func @transform_1(%arg0: i32) -> (i32, i32) {
    %c0_i32 = arith.constant 0 : i32
    %c0_i32_0 = arith.constant 0 : i32
    %c0_i32_1 = arith.constant 0 : i32
    return %c0_i32, %c0_i32_0 : i32, i32
  }
  func.func @transform_2(%arg0: i32) -> (i32, i32) {
    %c0_i32 = arith.constant 0 : i32
    %c0_i32_0 = arith.constant 0 : i32
    %c0_i32_1 = arith.constant 0 : i32
    return %c0_i32, %c0_i32_0 : i32, i32
  }
  func.func @transform_3(%arg0: i32) -> (i32, i32) {
    %c0_i32 = arith.constant 0 : i32
    %c0_i32_0 = arith.constant 0 : i32
    %c0_i32_1 = arith.constant 0 : i32
    return %c0_i32, %c0_i32_0 : i32, i32
  }
  func.func @transform_4(%arg0: i32) -> (i32, i32) {
    %c0_i32 = arith.constant 0 : i32
    %c0_i32_0 = arith.constant 0 : i32
    %c0_i32_1 = arith.constant 0 : i32
    return %c0_i32, %c0_i32_0 : i32, i32
  }
  func.func @transform_5(%arg0: i32) -> (i32, i32) {
    %c0_i32 = arith.constant 0 : i32
    %c0_i32_0 = arith.constant 0 : i32
    %c0_i32_1 = arith.constant 0 : i32
    return %c0_i32, %c0_i32_0 : i32, i32
  }
  func.func @transform_6(%arg0: i32) -> (i32, i32) {
    %c0_i32 = arith.constant 0 : i32
    %c0_i32_0 = arith.constant 0 : i32
    %c0_i32_1 = arith.constant 0 : i32
    return %c0_i32, %c0_i32_0 : i32, i32
  }
  func.func @transform_7(%arg0: i32) -> (i32, i32) {
    %c0_i32 = arith.constant 0 : i32
    %c0_i32_0 = arith.constant 0 : i32
    %c0_i32_1 = arith.constant 0 : i32
    return %c0_i32, %c0_i32_0 : i32, i32
  }
  func.func @transform_8(%arg0: i32) -> (i32, i32, i32) {
    %c0_i32 = arith.constant 0 : i32
    %c0_i32_0 = arith.constant 0 : i32
    %c0_i32_1 = arith.constant 0 : i32
    return %arg0, %c0_i32, %c0_i32_0 : i32, i32, i32
  }
}

</mosaic_0001>

<llo_original>
// kernel: tpu_custom_call.1
$region0: #{tpu_custom_call.1}
  #allocation0 [shape = 'u32[]', space=smem, size = 0x4, offset = 0x4, fixed_abs, tag = 'smem constant byte address 0x4 - core index']
  #allocation1 [shape = 'u32[144,128]{1,0:T(1,128)}', space=vmem, size = 0x12000, scoped, tag = 'internal scratch']
  %s0 = inlined_call_operand.hbm [shape: f32[8,8,512], index: 0, kind: input, shape index: {}]
  %s1 = inlined_call_operand.vmem [shape: f32[8,4], index: 1, kind: input, shape index: {}]
  %s2 = inlined_call_operand.vmem [shape: f32[8,4], index: 2, kind: input, shape index: {}]
  %s3 = inlined_call_operand.vmem [shape: f32[1,4], index: 3, kind: input, shape index: {}]
  %s4 = inlined_call_operand.vmem [shape: f32[4,8], index: 4, kind: input, shape index: {}]
  %s5 = inlined_call_operand.vmem [shape: f32[4,8], index: 5, kind: input, shape index: {}]
  %s6 = inlined_call_operand.vmem [shape: f32[1,8], index: 6, kind: input, shape index: {}]
  %s7 = inlined_call_operand.vmem [shape: f32[1,8], index: 7, kind: input, shape index: {}]
  %s8 = inlined_call_operand.hbm [shape: f32[8,8,512], index: 8, kind: output, shape index: {}]
  %s9 = sld [smem:[#allocation0]]
  $region69: #{tpu_custom_call.1} parent=0
    _
  %s11 = ssub.s32 1, %s9
  %s12 = scalar_select 0, %s11, %s9
  $region1: #{tpu_custom_call.1} parent=0
    #allocation2 [shape = 'u8[65536]{0}', space=vmem, size = 0x10000, scoped, tag = 'input window, operand 0']
    #allocation3 [shape = 's32[2]{0}', space=sflag, size = 0x8, scoped, tag = 'scoped memory for tpu_custom_call.1']
    #allocation4 [shape = 's32[2]{0}', space=sflag, size = 0x8, scoped, tag = 'scoped memory for tpu_custom_call.1']
    #allocation5 [shape = 'u8[65536]{0}', space=vmem, size = 0x10000, scoped, tag = 'output window, operand 0']
    %13 = vsyncpa [#allocation3], 0
    %s14 = scalar_lea.sflag [#allocation3], 1
    %15 = vsyncpa %s14, 0
    %16 = vsyncpa [#allocation4], 0
    %s17 = scalar_lea.sflag [#allocation4], 1
    %18 = vsyncpa %s17, 0
    loop: start=0, step=1, limit=6
    $region2: #{tpu_custom_call.1} parent=1 // loop_pre_header
      _
    $region3: #{tpu_custom_call.1} parent=1 // loop_header
      %s20 = sphi 0, %s24
      %p21 = scmp.ge.s32.totalorder %s20, 6
      %s30 = sphi 0, %s32
      %s33 = sphi 0, %s30
      %s34 = sphi 0, %s33
      %s50 = sphi 0, %s34
      %s54 = sphi 0, %s54
      %s56 = sphi 0, %s54
      %s57 = sphi 0, %s56
      %s71 = sphi 0, %s57
      %s75 = sphi 0, %s75
      %s77 = sphi 0, %s75
      %s78 = sphi 0, %s77
      %s92 = sphi 0, %s78
      %s96 = sphi 0, %s96
      %s98 = sphi 0, %s96
      %s99 = sphi 0, %s98
      %s113 = sphi 0, %s99
      %s117 = sphi 0, %s117
      %s119 = sphi 0, %s117
      %s120 = sphi 0, %s119
      %s134 = sphi 0, %s120
      %s138 = sphi 0, %s138
      %s140 = sphi 0, %s138
      %s141 = sphi 0, %s140
      %s155 = sphi 0, %s141
      %s159 = sphi 0, %s159
      %s161 = sphi 0, %s159
      %s162 = sphi 0, %s161
      %s176 = sphi 0, %s162
      %s180 = sphi 0, %s180
      %s182 = sphi 0, %s180
      %s183 = sphi 0, %s182
      %s197 = sphi 0, %s183
      %s203 = sphi 0, %s205
      %s206 = sphi 0, %s203
      %s207 = sphi 0, %s206
      %s223 = sphi 0, %s207
    $region4: #{tpu_custom_call.1} parent=1 // loop_header_branch
      %23 = sbr.rel (%p21) target = $region8
    $region5: #{tpu_custom_call.1} parent=1 // loop_body
      %s25 = ssub.s32 %s20, 1
      %s26 = ssub.s32 %s20, 2
      %s27 = sadd.s32 %s20, 1
      %s28 = ssub.s32 %s20, %s27
      %p29 = scmp.eq.s32.totalorder %s28, 0
      %s31 = sadd.s32 %s30, 1
      %s32 = scalar_select %p29, %s30, %s31
      %p35 = pneg %p29
      %p36 = scmp.eq.s32.totalorder %s20, 3
      %p37 = por %p35, %p36
      %p38 = scmp.ne.s32.totalorder %s30, %s33
      %p39 = scmp.eq.s32.totalorder %s20, 0
      %p40 = por %p38, %p39
      %p41 = scmp.ne.s32.totalorder %s30, %s33
      %p42 = scmp.eq.s32.totalorder %s25, 3
      %p43 = por %p41, %p42
      %p44 = scmp.ne.s32.totalorder %s33, %s34
      %p45 = scmp.eq.s32.totalorder %s25, 0
      %p46 = por %p44, %p45
      %p47 = scmp.ne.s32.totalorder %s33, %s34
      %p48 = scmp.eq.s32.totalorder %s26, 3
      %p49 = por %p47, %p48
      %p51 = scmp.ne.s32.totalorder %s34, %s50
      %p52 = scmp.eq.s32.totalorder %s26, 0
      %p53 = por %p51, %p52
      %s55 = sadd.s32 %s54, 1
      %p58 = scmp.eq.s32.totalorder %s20, 3
      %p59 = scmp.ne.s32.totalorder %s54, %s56
      %p60 = scmp.eq.s32.totalorder %s20, 0
      %p61 = por %p59, %p60
      %p62 = scmp.ne.s32.totalorder %s54, %s56
      %p63 = scmp.eq.s32.totalorder %s25, 3
      %p64 = por %p62, %p63
      %p65 = scmp.ne.s32.totalorder %s56, %s57
      %p66 = scmp.eq.s32.totalorder %s25, 0
      %p67 = por %p65, %p66
      %p68 = scmp.ne.s32.totalorder %s56, %s57
      %p69 = scmp.eq.s32.totalorder %s26, 3
      %p70 = por %p68, %p69
      %p72 = scmp.ne.s32.totalorder %s57, %s71
      %p73 = scmp.eq.s32.totalorder %s26, 0
      %p74 = por %p72, %p73
      %s76 = sadd.s32 %s75, 1
      %p79 = scmp.eq.s32.totalorder %s20, 3
      %p80 = scmp.ne.s32.totalorder %s75, %s77
      %p81 = scmp.eq.s32.totalorder %s20, 0
      %p82 = por %p80, %p81
      %p83 = scmp.ne.s32.totalorder %s75, %s77
      %p84 = scmp.eq.s32.totalorder %s25, 3
      %p85 = por %p83, %p84
      %p86 = scmp.ne.s32.totalorder %s77, %s78
      %p87 = scmp.eq.s32.totalorder %s25, 0
      %p88 = por %p86, %p87
      %p89 = scmp.ne.s32.totalorder %s77, %s78
      %p90 = scmp.eq.s32.totalorder %s26, 3
      %p91 = por %p89, %p90
      %p93 = scmp.ne.s32.totalorder %s78, %s92
      %p94 = scmp.eq.s32.totalorder %s26, 0
      %p95 = por %p93, %p94
      %s97 = sadd.s32 %s96, 1
      %p100 = scmp.eq.s32.totalorder %s20, 3
      %p101 = scmp.ne.s32.totalorder %s96, %s98
      %p102 = scmp.eq.s32.totalorder %s20, 0
      %p103 = por %p101, %p102
      %p104 = scmp.ne.s32.totalorder %s96, %s98
      %p105 = scmp.eq.s32.totalorder %s25, 3
      %p106 = por %p104, %p105
      %p107 = scmp.ne.s32.totalorder %s98, %s99
      %p108 = scmp.eq.s32.totalorder %s25, 0
      %p109 = por %p107, %p108
      %p110 = scmp.ne.s32.totalorder %s98, %s99
      %p111 = scmp.eq.s32.totalorder %s26, 3
      %p112 = por %p110, %p111
      %p114 = scmp.ne.s32.totalorder %s99, %s113
      %p115 = scmp.eq.s32.totalorder %s26, 0
      %p116 = por %p114, %p115
      %s118 = sadd.s32 %s117, 1
      %p121 = scmp.eq.s32.totalorder %s20, 3
      %p122 = scmp.ne.s32.totalorder %s117, %s119
      %p123 = scmp.eq.s32.totalorder %s20, 0
      %p124 = por %p122, %p123
      %p125 = scmp.ne.s32.totalorder %s117, %s119
      %p126 = scmp.eq.s32.totalorder %s25, 3
      %p127 = por %p125, %p126
      %p128 = scmp.ne.s32.totalorder %s119, %s120
      %p129 = scmp.eq.s32.totalorder %s25, 0
      %p130 = por %p128, %p129
      %p131 = scmp.ne.s32.totalorder %s119, %s120
      %p132 = scmp.eq.s32.totalorder %s26, 3
      %p133 = por %p131, %p132
      %p135 = scmp.ne.s32.totalorder %s120, %s134
      %p136 = scmp.eq.s32.totalorder %s26, 0
      %p137 = por %p135, %p136
      %s139 = sadd.s32 %s138, 1
      %p142 = scmp.eq.s32.totalorder %s20, 3
      %p143 = scmp.ne.s32.totalorder %s138, %s140
      %p144 = scmp.eq.s32.totalorder %s20, 0
      %p145 = por %p143, %p144
      %p146 = scmp.ne.s32.totalorder %s138, %s140
      %p147 = scmp.eq.s32.totalorder %s25, 3
      %p148 = por %p146, %p147
      %p149 = scmp.ne.s32.totalorder %s140, %s141
      %p150 = scmp.eq.s32.totalorder %s25, 0
      %p151 = por %p149, %p150
      %p152 = scmp.ne.s32.totalorder %s140, %s141
      %p153 = scmp.eq.s32.totalorder %s26, 3
      %p154 = por %p152, %p153
      %p156 = scmp.ne.s32.totalorder %s141, %s155
      %p157 = scmp.eq.s32.totalorder %s26, 0
      %p158 = por %p156, %p157
      %s160 = sadd.s32 %s159, 1
      %p163 = scmp.eq.s32.totalorder %s20, 3
      %p164 = scmp.ne.s32.totalorder %s159, %s161
      %p165 = scmp.eq.s32.totalorder %s20, 0
      %p166 = por %p164, %p165
      %p167 = scmp.ne.s32.totalorder %s159, %s161
      %p168 = scmp.eq.s32.totalorder %s25, 3
      %p169 = por %p167, %p168
      %p170 = scmp.ne.s32.totalorder %s161, %s162
      %p171 = scmp.eq.s32.totalorder %s25, 0
      %p172 = por %p170, %p171
      %p173 = scmp.ne.s32.totalorder %s161, %s162
      %p174 = scmp.eq.s32.totalorder %s26, 3
      %p175 = por %p173, %p174
      %p177 = scmp.ne.s32.totalorder %s162, %s176
      %p178 = scmp.eq.s32.totalorder %s26, 0
      %p179 = por %p177, %p178
      %s181 = sadd.s32 %s180, 1
      %p184 = scmp.eq.s32.totalorder %s20, 3
      %p185 = scmp.ne.s32.totalorder %s180, %s182
      %p186 = scmp.eq.s32.totalorder %s20, 0
      %p187 = por %p185, %p186
      %p188 = scmp.ne.s32.totalorder %s180, %s182
      %p189 = scmp.eq.s32.totalorder %s25, 3
      %p190 = por %p188, %p189
      %p191 = scmp.ne.s32.totalorder %s182, %s183
      %p192 = scmp.eq.s32.totalorder %s25, 0
      %p193 = por %p191, %p192
      %p194 = scmp.ne.s32.totalorder %s182, %s183
      %p195 = scmp.eq.s32.totalorder %s26, 3
      %p196 = por %p194, %p195
      %p198 = scmp.ne.s32.totalorder %s183, %s197
      %p199 = scmp.eq.s32.totalorder %s26, 0
      %p200 = por %p198, %p199
      %s201 = ssub.s32 %s20, %s27
      %p202 = scmp.eq.s32.totalorder %s201, 0
      %s204 = sadd.s32 %s203, 1
      %s205 = scalar_select %p202, %s203, %s204
      %p208 = pneg %p202
      %p209 = scmp.eq.s32.totalorder %s20, 3
      %p210 = por %p208, %p209
      %p211 = scmp.ne.s32.totalorder %s203, %s206
      %p212 = scmp.eq.s32.totalorder %s20, 0
      %p213 = por %p211, %p212
      %p214 = scmp.ne.s32.totalorder %s203, %s206
      %p215 = scmp.eq.s32.totalorder %s25, 3
      %p216 = por %p214, %p215
      %p217 = scmp.ne.s32.totalorder %s206, %s207
      %p218 = scmp.eq.s32.totalorder %s25, 0
      %p219 = por %p217, %p218
      %p220 = scmp.ne.s32.totalorder %s206, %s207
      %p221 = scmp.eq.s32.totalorder %s26, 3
      %p222 = por %p220, %p221
      %p224 = scmp.ne.s32.totalorder %s207, %s223
      %p225 = scmp.eq.s32.totalorder %s26, 0
      %p226 = por %p224, %p225
      %p227 = scmp.le.s32.totalorder 1, %s20
      %p228 = scmp.lt.s32.totalorder %s20, 5
      %p229 = pnand %p227, %p228
      %p230 = pneg %p229
      // Predicated region
      $region9: #{tpu_custom_call.1} parent=5 // pred_check
        _
      $region10: #{tpu_custom_call.1} parent=5 // pred_check_branch
        %232 = sbr.rel (%p229) target = $region12
      $region11: #{tpu_custom_call.1} parent=5 // pred_region
        %s233 = ssub.s32 %s20, 1
        // Predicated region
        $region13: #{tpu_custom_call.1} parent=11 // pred_check
          %p234 = pneg %p67
        $region14: #{tpu_custom_call.1} parent=11 // pred_check_branch
          %236 = sbr.rel (%p234) target = $region16
        $region15: #{tpu_custom_call.1} parent=11 // pred_region
          _
        $region16: #{tpu_custom_call.1} parent=11 // pred_fallthru
          _
        // Predicated region
        $region17: #{tpu_custom_call.1} parent=11 // pred_check
          %p237 = pneg %p88
        $region18: #{tpu_custom_call.1} parent=11 // pred_check_branch
          %239 = sbr.rel (%p237) target = $region20
        $region19: #{tpu_custom_call.1} parent=11 // pred_region
          _
        $region20: #{tpu_custom_call.1} parent=11 // pred_fallthru
          _
        // Predicated region
        $region21: #{tpu_custom_call.1} parent=11 // pred_check
          %p240 = pneg %p109
        $region22: #{tpu_custom_call.1} parent=11 // pred_check_branch
          %242 = sbr.rel (%p240) target = $region24
        $region23: #{tpu_custom_call.1} parent=11 // pred_region
          _
        $region24: #{tpu_custom_call.1} parent=11 // pred_fallthru
          _
        // Predicated region
        $region25: #{tpu_custom_call.1} parent=11 // pred_check
          %p243 = pneg %p130
        $region26: #{tpu_custom_call.1} parent=11 // pred_check_branch
          %245 = sbr.rel (%p243) target = $region28
        $region27: #{tpu_custom_call.1} parent=11 // pred_region
          _
        $region28: #{tpu_custom_call.1} parent=11 // pred_fallthru
          _
        // Predicated region
        $region29: #{tpu_custom_call.1} parent=11 // pred_check
          %p246 = pneg %p151
        $region30: #{tpu_custom_call.1} parent=11 // pred_check_branch
          %248 = sbr.rel (%p246) target = $region32
        $region31: #{tpu_custom_call.1} parent=11 // pred_region
          _
        $region32: #{tpu_custom_call.1} parent=11 // pred_fallthru
          _
        // Predicated region
        $region33: #{tpu_custom_call.1} parent=11 // pred_check
          %p249 = pneg %p172
        $region34: #{tpu_custom_call.1} parent=11 // pred_check_branch
          %251 = sbr.rel (%p249) target = $region36
        $region35: #{tpu_custom_call.1} parent=11 // pred_region
          _
        $region36: #{tpu_custom_call.1} parent=11 // pred_fallthru
          _
        // Predicated region
        $region37: #{tpu_custom_call.1} parent=11 // pred_check
          %p252 = pneg %p193
        $region38: #{tpu_custom_call.1} parent=11 // pred_check_branch
          %254 = sbr.rel (%p252) target = $region40
        $region39: #{tpu_custom_call.1} parent=11 // pred_region
          _
        $region40: #{tpu_custom_call.1} parent=11 // pred_fallthru
          _
      $region12: #{tpu_custom_call.1} parent=5 // pred_fallthru
        _
      %p255 = scmp.lt.s32.totalorder %s20, 4
      // Predicated region
      $region41: #{tpu_custom_call.1} parent=5 // pred_check
        %p256 = pneg %p255
      $region42: #{tpu_custom_call.1} parent=5 // pred_check_branch
        %258 = sbr.rel (%p256) target = $region44
      $region43: #{tpu_custom_call.1} parent=5 // pred_region
        // Predicated region
        $region45: #{tpu_custom_call.1} parent=43 // pred_check
          %p259 = pneg %p40
        $region46: #{tpu_custom_call.1} parent=43 // pred_check_branch
          %261 = sbr.rel (%p259) target = $region48
        $region47: #{tpu_custom_call.1} parent=43 // pred_region
          %s262 = sand.u32 %s30, 1
          %s263 = scalar_lea.sflag [#allocation3], %s262
          %s264 = sand.u32 %s30, 1
          %s265 = smul.addr %s264, 64
          %s266 = scalar_lea.vmem [#allocation2], %s265
          %s267 = smul.u32 2, %s20
          %s269 = ssub.s32 1024, 1024
          %270 = vsyncadd %s263, %s269
          %s271 = smul.addr %s267, 4
          %s272 = smul.addr %s271, 128
          %s273 = scalar_lea.hbm %s0, %s272
          %s274 = sshll.u32 %s266, 4
          %s275 = int_to_ptr.vmem [resolvable:$true] %s274
          %280 = dma.hbm_to_vmem [thread:$0]  %s273, 1024, %s275, %s263, 512, 512, 32
        $region48: #{tpu_custom_call.1} parent=43 // pred_fallthru
          _
      $region44: #{tpu_custom_call.1} parent=5 // pred_fallthru
        _
      %p281 = scmp.le.s32.totalorder 1, %s20
      %p282 = scmp.lt.s32.totalorder %s20, 5
      %p283 = pnand %p281, %p282
      %p284 = pneg %p283
      // Predicated region
      $region49: #{tpu_custom_call.1} parent=5 // pred_check
        _
      $region50: #{tpu_custom_call.1} parent=5 // pred_check_branch
        %286 = sbr.rel (%p283) target = $region52
      $region51: #{tpu_custom_call.1} parent=5 // pred_region
        %s287 = ssub.s32 %s20, 1
        %s288 = sand.u32 %s33, 1
        %s289 = scalar_lea.sflag [#allocation3], %s288
        %s290 = sand.u32 %s33, 1
        %s291 = smul.addr %s290, 64
        %s292 = scalar_lea.vmem [#allocation2], %s291
        // Predicated region
        $region53: #{tpu_custom_call.1} parent=51 // pred_check
          %p293 = pneg %p46
        $region54: #{tpu_custom_call.1} parent=51 // pred_check_branch
          %295 = sbr.rel (%p293) target = $region56
        $region55: #{tpu_custom_call.1} parent=51 // pred_region
          %296 = dma.done %s289, 1024
        $region56: #{tpu_custom_call.1} parent=51 // pred_fallthru
          _
        %s297 = sand.u32 %s33, 1
        %s298 = scalar_lea.sflag [#allocation3], %s297
        %s299 = sand.u32 %s33, 1
        %s300 = smul.addr %s299, 64
        %s301 = scalar_lea.vmem [#allocation2], %s300
        %p302 = pneg %p46
        %p303 = pneg %p43
        %p304 = pneg %p67
        %p305 = pneg %p64
        %p306 = pneg %p88
        %p307 = pneg %p85
        %p308 = pneg %p109
        %p309 = pneg %p106
        %p310 = pneg %p130
        %p311 = pneg %p127
        %p312 = pneg %p151
        %p313 = pneg %p148
        %p314 = pneg %p172
        %p315 = pneg %p169
        %p316 = pneg %p193
        %p317 = pneg %p190
        %p318 = pneg %p219
        %p319 = pneg %p216
        %s320 = sand.u32 %s206, 1
        %s321 = scalar_lea.sflag [#allocation4], %s320
        %s322 = sand.u32 %s206, 1
        %s323 = smul.addr %s322, 64
        %s324 = scalar_lea.vmem [#allocation5], %s323
        %s325 = smul.u32 2, %s25
        %s326 = smul.u32 2, %s25
        %v327 = vlaneseq
        %v328 = vand.u32 %v327, 127
        %v329 = vadd.s32 %v328, 128
        %v330 = vadd.s32 %v328, 256
        %v331 = vadd.s32 %v328, 384
        %v332 = vand.u32 %v328, 1
        %v333 = vand.u32 %v329, 1
        %v334 = vand.u32 %v330, 1
        %v335 = vand.u32 %v331, 1
        %vm336 = vcmp.eq.s32.totalorder %v332, 1
        %vm337 = vcmp.eq.s32.totalorder %v333, 1
        %vm338 = vcmp.eq.s32.totalorder %v334, 1
        %vm339 = vcmp.eq.s32.totalorder %v335, 1
        %v340 = vld [vmem:[%s292] sm:$0xff]
        %v341 = vld [vmem:[%s292 + $0x8] sm:$0xff]
        %v342 = vld [vmem:[%s292 + $0x10] sm:$0xff]
        %v343 = vld [vmem:[%s292 + $0x18] sm:$0xff]
        %v344 = vld [vmem:[%s292 + $0x20] sm:$0xff]
        %v345 = vld [vmem:[%s292 + $0x28] sm:$0xff]
        %v346 = vld [vmem:[%s292 + $0x30] sm:$0xff]
        %v347 = vld [vmem:[%s292 + $0x38] sm:$0xff]
        %v348 = vsel %vm336, 0.0, %v340
        %v349 = vsel %vm337, 0.0, %v341
        %v350 = vsel %vm338, 0.0, %v342
        %v351 = vsel %vm339, 0.0, %v343
        %v352 = vsel %vm336, 0.0, %v344
        %v353 = vsel %vm337, 0.0, %v345
        %v354 = vsel %vm338, 0.0, %v346
        %v355 = vsel %vm339, 0.0, %v347
        %v356 = vadd.f32 %v348, %v349
        %v357 = vadd.f32 %v356, %v350
        %v358 = vadd.f32 %v357, %v351
        %359 = vadd.xlane.f32.xlu0 %v358
        %v360 = vpop.xlane.xlu0 %359
        %v361 = vadd.f32 %v352, %v353
        %v362 = vadd.f32 %v361, %v354
        %v363 = vadd.f32 %v362, %v355
        %364 = vadd.xlane.f32.xlu0 %v363
        %v365 = vpop.xlane.xlu0 %364
        %v366 = vsel %vm336, %v340, 0.0
        %v367 = vsel %vm337, %v341, 0.0
        %v368 = vsel %vm338, %v342, 0.0
        %v369 = vsel %vm339, %v343, 0.0
        %v370 = vsel %vm336, %v344, 0.0
        %v371 = vsel %vm337, %v345, 0.0
        %v372 = vsel %vm338, %v346, 0.0
        %v373 = vsel %vm339, %v347, 0.0
        %v374 = vadd.f32 %v366, %v367
        %v375 = vadd.f32 %v374, %v368
        %v376 = vadd.f32 %v375, %v369
        %377 = vadd.xlane.f32.xlu0 %v376
        %v378 = vpop.xlane.xlu0 %377
        %v379 = vadd.f32 %v370, %v371
        %v380 = vadd.f32 %v379, %v372
        %v381 = vadd.f32 %v380, %v373
        %382 = vadd.xlane.f32.xlu0 %v381
        %v383 = vpop.xlane.xlu0 %382
        %v384 = vld [vmem:[%s1] sm:$0xff]
        %v385 = vld [vmem:[%s2] sm:$0xff]
        %v388 = vlaneseq
        %v389 = vshrl.u32 %v388, 7
        %v390 = vsub.s32 %v328, %v389
        %v391 = vrot.slane %v378, %v390
        %v392 = vlaneseq
        %v393 = vshrl.u32 %v392, 7
        %v394 = vsub.s32 %v328, %v393
        %v395 = vrot.slane %v383, %v394
        %vm396 = vcmask 1041409
        %v397 = vsel %vm396, %v395, %v391
        %vm398 = vcmask 64512
        %v399 = vsel %vm398, %v397, 0
        %401 = vmatprep.subr.mxu0 0.0
        %402 = vmatpush1.msra.mxu0 %v385
        %403 = vmatprep.subr.mxu0 0.0
        %404 = vmatpush1.msra.mxu0 0.0
        %405 = vmatprep.subr.mxu0 0.0
        %406 = vmatpush1.msra.mxu0 0.0
        %407 = vmatprep.subr.mxu0 0.0
        %408 = vmatpush1.msra.mxu0 0.0
        %409 = vmatprep.subr.mxu0 0.0
        %410 = vmatpush1.msra.mxu0 0.0
        %411 = vmatprep.subr.mxu0 0.0
        %412 = vmatpush1.msra.mxu0 0.0
        %413 = vmatprep.subr.mxu0 0.0
        %414 = vmatpush1.msra.mxu0 0.0
        %415 = vmatprep.subr.mxu0 0.0
        %416 = vmatpush1.msra.mxu0 0.0
        %417 = vmatprep.subr.mxu0 0.0
        %418 = vmatpush1.msra.mxu0 0.0
        %419 = vmatprep.subr.mxu0 0.0
        %420 = vmatpush1.msra.mxu0 0.0
        %421 = vmatprep.subr.mxu0 0.0
        %422 = vmatpush1.msra.mxu0 0.0
        %423 = vmatprep.subr.mxu0 0.0
        %424 = vmatpush1.msra.mxu0 0.0
        %425 = vmatprep.subr.mxu0 0.0
        %426 = vmatpush1.msra.mxu0 0.0
        %427 = vmatprep.subr.mxu0 0.0
        %428 = vmatpush1.msra.mxu0 0.0
        %429 = vmatprep.subr.mxu0 0.0
        %430 = vmatpush1.msra.mxu0 0.0
        %431 = vmatprep.subr.mxu0 0.0
        %432 = vmatpush1.msra.mxu0 0.0
        %433 = vmatprep.subr.mxu0 0.0
        %434 = vmatpush1.msra.mxu0 0.0
        %435 = vmatprep.subr.mxu0 0.0
        %436 = vmatpush1.msra.mxu0 0.0
        %437 = vmatprep.subr.mxu0 0.0
        %438 = vmatpush1.msra.mxu0 0.0
        %439 = vmatprep.subr.mxu0 0.0
        %440 = vmatpush1.msra.mxu0 0.0
        %441 = vmatprep.subr.mxu0 0.0
        %442 = vmatpush1.msra.mxu0 0.0
        %443 = vmatprep.subr.mxu0 0.0
        %444 = vmatpush1.msra.mxu0 0.0
        %445 = vmatprep.subr.mxu0 0.0
        %446 = vmatpush1.msra.mxu0 0.0
        %447 = vmatprep.subr.mxu0 0.0
        %448 = vmatpush1.msra.mxu0 0.0
        %449 = vmatprep.subr.mxu0 0.0
        %450 = vmatpush1.msra.mxu0 0.0
        %451 = vmatprep.subr.mxu0 0.0
        %452 = vmatpush1.msra.mxu0 0.0
        %453 = vmatprep.subr.mxu0 0.0
        %454 = vmatpush1.msra.mxu0 0.0
        %455 = vmatprep.subr.mxu0 0.0
        %456 = vmatpush1.msra.mxu0 0.0
        %457 = vmatprep.subr.mxu0 0.0
        %458 = vmatpush1.msra.mxu0 0.0
        %459 = vmatprep.subr.mxu0 0.0
        %460 = vmatpush1.msra.mxu0 0.0
        %461 = vmatprep.subr.mxu0 0.0
        %462 = vmatpush1.msra.mxu0 0.0
        %463 = vmatprep.subr.mxu0 0.0
        %464 = vmatpush1.msra.mxu0 0.0
        %465 = vmatprep.mubr.f32.mxu0 0.0
        %466 = vmatmul.mubr.f32.gmra.mrb[0].mxu0 %v399
        %v467 = vpop.f32.mrb[0].mxu0
        %v468 = vadd.f32 0.0, %v467
        %v469 = vpop.f32.mrb[0].mxu0
        %470 = vdwg.mxu0
        %v473 = vlaneseq
        %v474 = vshrl.u32 %v473, 7
        %v475 = vsub.s32 %v328, %v474
        %v476 = vrot.slane %v360, %v475
        %v477 = vlaneseq
        %v478 = vshrl.u32 %v477, 7
        %v479 = vsub.s32 %v328, %v478
        %v480 = vrot.slane %v365, %v479
        %v481 = vsel %vm396, %v480, %v476
        %v482 = vsel %vm398, %v481, 0
        %484 = vmatprep.subr.mxu0 0.0
        %485 = vmatpush1.msra.mxu0 %v384
        %486 = vmatprep.subr.mxu0 0.0
        %487 = vmatpush1.msra.mxu0 0.0
        %488 = vmatprep.subr.mxu0 0.0
        %489 = vmatpush1.msra.mxu0 0.0
        %490 = vmatprep.subr.mxu0 0.0
        %491 = vmatpush1.msra.mxu0 0.0
        %492 = vmatprep.subr.mxu0 0.0
        %493 = vmatpush1.msra.mxu0 0.0
        %494 = vmatprep.subr.mxu0 0.0
        %495 = vmatpush1.msra.mxu0 0.0
        %496 = vmatprep.subr.mxu0 0.0
        %497 = vmatpush1.msra.mxu0 0.0
        %498 = vmatprep.subr.mxu0 0.0
        %499 = vmatpush1.msra.mxu0 0.0
        %500 = vmatprep.subr.mxu0 0.0
        %501 = vmatpush1.msra.mxu0 0.0
        %502 = vmatprep.subr.mxu0 0.0
        %503 = vmatpush1.msra.mxu0 0.0
        %504 = vmatprep.subr.mxu0 0.0
        %505 = vmatpush1.msra.mxu0 0.0
        %506 = vmatprep.subr.mxu0 0.0
        %507 = vmatpush1.msra.mxu0 0.0
        %508 = vmatprep.subr.mxu0 0.0
        %509 = vmatpush1.msra.mxu0 0.0
        %510 = vmatprep.subr.mxu0 0.0
        %511 = vmatpush1.msra.mxu0 0.0
        %512 = vmatprep.subr.mxu0 0.0
        %513 = vmatpush1.msra.mxu0 0.0
        %514 = vmatprep.subr.mxu0 0.0
        %515 = vmatpush1.msra.mxu0 0.0
        %516 = vmatprep.subr.mxu0 0.0
        %517 = vmatpush1.msra.mxu0 0.0
        %518 = vmatprep.subr.mxu0 0.0
        %519 = vmatpush1.msra.mxu0 0.0
        %520 = vmatprep.subr.mxu0 0.0
        %521 = vmatpush1.msra.mxu0 0.0
        %522 = vmatprep.subr.mxu0 0.0
        %523 = vmatpush1.msra.mxu0 0.0
        %524 = vmatprep.subr.mxu0 0.0
        %525 = vmatpush1.msra.mxu0 0.0
        %526 = vmatprep.subr.mxu0 0.0
        %527 = vmatpush1.msra.mxu0 0.0
        %528 = vmatprep.subr.mxu0 0.0
        %529 = vmatpush1.msra.mxu0 0.0
        %530 = vmatprep.subr.mxu0 0.0
        %531 = vmatpush1.msra.mxu0 0.0
        %532 = vmatprep.subr.mxu0 0.0
        %533 = vmatpush1.msra.mxu0 0.0
        %534 = vmatprep.subr.mxu0 0.0
        %535 = vmatpush1.msra.mxu0 0.0
        %536 = vmatprep.subr.mxu0 0.0
        %537 = vmatpush1.msra.mxu0 0.0
        %538 = vmatprep.subr.mxu0 0.0
        %539 = vmatpush1.msra.mxu0 0.0
        %540 = vmatprep.subr.mxu0 0.0
        %541 = vmatpush1.msra.mxu0 0.0
        %542 = vmatprep.subr.mxu0 0.0
        %543 = vmatpush1.msra.mxu0 0.0
        %544 = vmatprep.subr.mxu0 0.0
        %545 = vmatpush1.msra.mxu0 0.0
        %546 = vmatprep.subr.mxu0 0.0
        %547 = vmatpush1.msra.mxu0 0.0
        %548 = vmatprep.mubr.f32.mxu0 0.0
        %549 = vmatmul.mubr.f32.gmra.mrb[0].mxu0 %v482
        %v550 = vpop.f32.mrb[0].mxu0
        %v551 = vadd.f32 %v468, %v550
        %v552 = vpop.f32.mrb[0].mxu0
        %553 = vdwg.mxu0
        %v554 = vld [vmem:[%s3] sm:$0x1]
        %v556 = vlaneseq
        %v557 = vshrl.u32 %v556, 7
        %v558 = vsub.s32 0, %v557
        %v559 = vrot.slane %v554, %v558
        %v561 = vadd.f32 %v551, %v559
        %v562 = vld [vmem:[%s4] sm:$0xf]
        %v563 = vld [vmem:[%s6] sm:$0x1]
        %v565 = vlaneseq
        %v566 = vshrl.u32 %v565, 7
        %v567 = vsub.s32 0, %v566
        %v568 = vrot.slane %v563, %v567
        %vm570 = vcmask 31744
        %v572 = vsel %vm570, %v561, 0
        %vm574 = vcmask 1043456
        %v576 = vsel %vm574, %v562, 0
        %578 = vmatprep.subr.mxu0 0.0
        %579 = vmatpush1.msra.mxu0 %v576
        %580 = vmatprep.subr.mxu0 0.0
        %581 = vmatpush1.msra.mxu0 0.0
        %582 = vmatprep.subr.mxu0 0.0
        %583 = vmatpush1.msra.mxu0 0.0
        %584 = vmatprep.subr.mxu0 0.0
        %585 = vmatpush1.msra.mxu0 0.0
        %586 = vmatprep.subr.mxu0 0.0
        %587 = vmatpush1.msra.mxu0 0.0
        %588 = vmatprep.subr.mxu0 0.0
        %589 = vmatpush1.msra.mxu0 0.0
        %590 = vmatprep.subr.mxu0 0.0
        %591 = vmatpush1.msra.mxu0 0.0
        %592 = vmatprep.subr.mxu0 0.0
        %593 = vmatpush1.msra.mxu0 0.0
        %594 = vmatprep.subr.mxu0 0.0
        %595 = vmatpush1.msra.mxu0 0.0
        %596 = vmatprep.subr.mxu0 0.0
        %597 = vmatpush1.msra.mxu0 0.0
        %598 = vmatprep.subr.mxu0 0.0
        %599 = vmatpush1.msra.mxu0 0.0
        %600 = vmatprep.subr.mxu0 0.0
        %601 = vmatpush1.msra.mxu0 0.0
        %602 = vmatprep.subr.mxu0 0.0
        %603 = vmatpush1.msra.mxu0 0.0
        %604 = vmatprep.subr.mxu0 0.0
        %605 = vmatpush1.msra.mxu0 0.0
        %606 = vmatprep.subr.mxu0 0.0
        %607 = vmatpush1.msra.mxu0 0.0
        %608 = vmatprep.subr.mxu0 0.0
        %609 = vmatpush1.msra.mxu0 0.0
        %610 = vmatprep.subr.mxu0 0.0
        %611 = vmatpush1.msra.mxu0 0.0
        %612 = vmatprep.subr.mxu0 0.0
        %613 = vmatpush1.msra.mxu0 0.0
        %614 = vmatprep.subr.mxu0 0.0
        %615 = vmatpush1.msra.mxu0 0.0
        %616 = vmatprep.subr.mxu0 0.0
        %617 = vmatpush1.msra.mxu0 0.0
        %618 = vmatprep.subr.mxu0 0.0
        %619 = vmatpush1.msra.mxu0 0.0
        %620 = vmatprep.subr.mxu0 0.0
        %621 = vmatpush1.msra.mxu0 0.0
        %622 = vmatprep.subr.mxu0 0.0
        %623 = vmatpush1.msra.mxu0 0.0
        %624 = vmatprep.subr.mxu0 0.0
        %625 = vmatpush1.msra.mxu0 0.0
        %626 = vmatprep.subr.mxu0 0.0
        %627 = vmatpush1.msra.mxu0 0.0
        %628 = vmatprep.subr.mxu0 0.0
        %629 = vmatpush1.msra.mxu0 0.0
        %630 = vmatprep.subr.mxu0 0.0
        %631 = vmatpush1.msra.mxu0 0.0
        %632 = vmatprep.subr.mxu0 0.0
        %633 = vmatpush1.msra.mxu0 0.0
        %634 = vmatprep.subr.mxu0 0.0
        %635 = vmatpush1.msra.mxu0 0.0
        %636 = vmatprep.subr.mxu0 0.0
        %637 = vmatpush1.msra.mxu0 0.0
        %638 = vmatprep.subr.mxu0 0.0
        %639 = vmatpush1.msra.mxu0 0.0
        %640 = vmatprep.subr.mxu0 0.0
        %641 = vmatpush1.msra.mxu0 0.0
        %642 = vmatprep.mubr.f32.mxu0 0.0
        %643 = vmatmul.mubr.f32.gmra.mrb[0].mxu0 %v572
        %v644 = vpop.f32.mrb[0].mxu0
        %v645 = vadd.f32 %v568, %v644
        %v646 = vpop.f32.mrb[0].mxu0
        %647 = vdwg.mxu0
        %v648 = vxor.u32 %v645, 2147483648
        %v649 = vmul.f32 %v648, 1.442695
        %v650 = vpow.pop %v649
        %v651 = vadd.f32 %v650, 1.0
        %v652 = vrcp.pop %v651
        %v653 = vmul.f32 1.0, %v652
        %v654 = vld [vmem:[%s5] sm:$0xf]
        %v655 = vld [vmem:[%s7] sm:$0x1]
        %v657 = vlaneseq
        %v658 = vshrl.u32 %v657, 7
        %v659 = vsub.s32 0, %v658
        %v660 = vrot.slane %v655, %v659
        %v663 = vsel %vm574, %v654, 0
        %665 = vmatprep.subr.mxu0 0.0
        %666 = vmatpush1.msra.mxu0 %v663
        %667 = vmatprep.subr.mxu0 0.0
        %668 = vmatpush1.msra.mxu0 0.0
        %669 = vmatprep.subr.mxu0 0.0
        %670 = vmatpush1.msra.mxu0 0.0
        %671 = vmatprep.subr.mxu0 0.0
        %672 = vmatpush1.msra.mxu0 0.0
        %673 = vmatprep.subr.mxu0 0.0
        %674 = vmatpush1.msra.mxu0 0.0
        %675 = vmatprep.subr.mxu0 0.0
        %676 = vmatpush1.msra.mxu0 0.0
        %677 = vmatprep.subr.mxu0 0.0
        %678 = vmatpush1.msra.mxu0 0.0
        %679 = vmatprep.subr.mxu0 0.0
        %680 = vmatpush1.msra.mxu0 0.0
        %681 = vmatprep.subr.mxu0 0.0
        %682 = vmatpush1.msra.mxu0 0.0
        %683 = vmatprep.subr.mxu0 0.0
        %684 = vmatpush1.msra.mxu0 0.0
        %685 = vmatprep.subr.mxu0 0.0
        %686 = vmatpush1.msra.mxu0 0.0
        %687 = vmatprep.subr.mxu0 0.0
        %688 = vmatpush1.msra.mxu0 0.0
        %689 = vmatprep.subr.mxu0 0.0
        %690 = vmatpush1.msra.mxu0 0.0
        %691 = vmatprep.subr.mxu0 0.0
        %692 = vmatpush1.msra.mxu0 0.0
        %693 = vmatprep.subr.mxu0 0.0
        %694 = vmatpush1.msra.mxu0 0.0
        %695 = vmatprep.subr.mxu0 0.0
        %696 = vmatpush1.msra.mxu0 0.0
        %697 = vmatprep.subr.mxu0 0.0
        %698 = vmatpush1.msra.mxu0 0.0
        %699 = vmatprep.subr.mxu0 0.0
        %700 = vmatpush1.msra.mxu0 0.0
        %701 = vmatprep.subr.mxu0 0.0
        %702 = vmatpush1.msra.mxu0 0.0
        %703 = vmatprep.subr.mxu0 0.0
        %704 = vmatpush1.msra.mxu0 0.0
        %705 = vmatprep.subr.mxu0 0.0
        %706 = vmatpush1.msra.mxu0 0.0
        %707 = vmatprep.subr.mxu0 0.0
        %708 = vmatpush1.msra.mxu0 0.0
        %709 = vmatprep.subr.mxu0 0.0
        %710 = vmatpush1.msra.mxu0 0.0
        %711 = vmatprep.subr.mxu0 0.0
        %712 = vmatpush1.msra.mxu0 0.0
        %713 = vmatprep.subr.mxu0 0.0
        %714 = vmatpush1.msra.mxu0 0.0
        %715 = vmatprep.subr.mxu0 0.0
        %716 = vmatpush1.msra.mxu0 0.0
        %717 = vmatprep.subr.mxu0 0.0
        %718 = vmatpush1.msra.mxu0 0.0
        %719 = vmatprep.subr.mxu0 0.0
        %720 = vmatpush1.msra.mxu0 0.0
        %721 = vmatprep.subr.mxu0 0.0
        %722 = vmatpush1.msra.mxu0 0.0
        %723 = vmatprep.subr.mxu0 0.0
        %724 = vmatpush1.msra.mxu0 0.0
        %725 = vmatprep.subr.mxu0 0.0
        %726 = vmatpush1.msra.mxu0 0.0
        %727 = vmatprep.subr.mxu0 0.0
        %728 = vmatpush1.msra.mxu0 0.0
        %729 = vmatprep.mubr.f32.mxu0 0.0
        %730 = vmatmul.mubr.f32.gmra.mrb[0].mxu0 %v572
        %v731 = vpop.f32.mrb[0].mxu0
        %v732 = vadd.f32 %v660, %v731
        %v733 = vpop.f32.mrb[0].mxu0
        %734 = vdwg.mxu0
        %v735 = vxor.u32 %v732, 2147483648
        %v736 = vmul.f32 %v735, 1.442695
        %v737 = vpow.pop %v736
        %v738 = vadd.f32 %v737, 1.0
        %v739 = vrcp.pop %v738
        %v740 = vmul.f32 1.0, %v739
        %v741 = vlaneseq
        %v742 = vshrl.u32 %v741, 7
        %v743 = vsub.s32 0, %v742
        %v744 = vrot.slane %v740, %v743
        %746 = vbcast.lane.b32.xlu0 %v744, 256
        %v747 = vpop.permute.xlu0 %746
        %v748 = vlaneseq
        %v749 = vshrl.u32 %v748, 7
        %v750 = vsub.s32 1, %v749
        %v751 = vrot.slane %v740, %v750
        %753 = vbcast.lane.b32.xlu0 %v751, 256
        %v754 = vpop.permute.xlu0 %753
        %v755 = vlaneseq
        %v756 = vshrl.u32 %v755, 7
        %v757 = vsub.s32 0, %v756
        %v758 = vrot.slane %v653, %v757
        %760 = vbcast.lane.b32.xlu0 %v758, 256
        %v761 = vpop.permute.xlu0 %760
        %v762 = vlaneseq
        %v763 = vshrl.u32 %v762, 7
        %v764 = vsub.s32 1, %v763
        %v765 = vrot.slane %v653, %v764
        %767 = vbcast.lane.b32.xlu0 %v765, 256
        %v768 = vpop.permute.xlu0 %767
        %v769 = vsel %vm336, %v747, %v761
        %v770 = vsel %vm337, %v747, %v761
        %v771 = vsel %vm338, %v747, %v761
        %v772 = vsel %vm339, %v747, %v761
        %v773 = vsel %vm336, %v754, %v768
        %v774 = vsel %vm337, %v754, %v768
        %v775 = vsel %vm338, %v754, %v768
        %v776 = vsel %vm339, %v754, %v768
        %v777 = vmul.f32 %v340, %v769
        %v778 = vmul.f32 %v341, %v770
        %v779 = vmul.f32 %v342, %v771
        %v780 = vmul.f32 %v343, %v772
        %v781 = vmul.f32 %v344, %v773
        %v782 = vmul.f32 %v345, %v774
        %v783 = vmul.f32 %v346, %v775
        %v784 = vmul.f32 %v347, %v776
        %785 = vst [vmem:[%s324] sm:$0xff] %v777
        %786 = vst [vmem:[%s324 + $0x8] sm:$0xff] %v778
        %787 = vst [vmem:[%s324 + $0x10] sm:$0xff] %v779
        %788 = vst [vmem:[%s324 + $0x18] sm:$0xff] %v780
        %789 = vst [vmem:[%s324 + $0x20] sm:$0xff] %v781
        %790 = vst [vmem:[%s324 + $0x28] sm:$0xff] %v782
        %791 = vst [vmem:[%s324 + $0x30] sm:$0xff] %v783
        %792 = vst [vmem:[%s324 + $0x38] sm:$0xff] %v784
        %s793 = sand.u32 %s206, 1
        %s794 = scalar_lea.sflag [#allocation4], %s793
        %s795 = sand.u32 %s206, 1
        %s796 = smul.addr %s795, 64
        %s797 = scalar_lea.vmem [#allocation5], %s796
        // Predicated region
        $region57: #{tpu_custom_call.1} parent=51 // pred_check
          %p798 = pneg %p216
        $region58: #{tpu_custom_call.1} parent=51 // pred_check_branch
          %800 = sbr.rel (%p798) target = $region60
        $region59: #{tpu_custom_call.1} parent=51 // pred_region
          %s801 = smul.u32 2, %s25
          %s803 = ssub.s32 1024, 1024
          %804 = vsyncadd %s794, %s803
          %s805 = smul.addr %s801, 4
          %s806 = smul.addr %s805, 128
          %s807 = scalar_lea.hbm %s8, %s806
          %s808 = sshll.u32 %s797, 4
          %s809 = int_to_ptr.vmem [resolvable:$true] %s808
          %814 = dma.vmem_to_hbm [thread:$0]  %s809, 1024, %s807, %s794, 512, 512, 32
        $region60: #{tpu_custom_call.1} parent=51 // pred_fallthru
          _
      $region52: #{tpu_custom_call.1} parent=5 // pred_fallthru
        _
      %p815 = scmp.le.s32.totalorder 2, %s20
      // Predicated region
      $region61: #{tpu_custom_call.1} parent=5 // pred_check
        %p816 = pneg %p815
      $region62: #{tpu_custom_call.1} parent=5 // pred_check_branch
        %818 = sbr.rel (%p816) target = $region64
      $region63: #{tpu_custom_call.1} parent=5 // pred_region
        %s819 = ssub.s32 %s20, 2
        // Predicated region
        $region65: #{tpu_custom_call.1} parent=63 // pred_check
          %p820 = pneg %p222
        $region66: #{tpu_custom_call.1} parent=63 // pred_check_branch
          %822 = sbr.rel (%p820) target = $region68
        $region67: #{tpu_custom_call.1} parent=63 // pred_region
          %s823 = sand.u32 %s207, 1
          %s824 = scalar_lea.sflag [#allocation4], %s823
          %s825 = sand.u32 %s207, 1
          %s826 = smul.addr %s825, 64
          %s827 = scalar_lea.vmem [#allocation5], %s826
          %828 = dma.done %s824, 1024
        $region68: #{tpu_custom_call.1} parent=63 // pred_fallthru
          _
      $region64: #{tpu_custom_call.1} parent=5 // pred_fallthru
        _
    $region6: #{tpu_custom_call.1} parent=1 // loop_footer
      %s24 = sadd.s32 1, %s20
    $region7: #{tpu_custom_call.1} parent=1 // loop_footer_branch
      %19 = sbr.rel target = $region3
    $region8: #{tpu_custom_call.1} parent=1 // loop_exit
      _
    %829 = vsyncpa [#allocation3], 1
    %s830 = scalar_lea.sflag [#allocation3], 1
    %831 = vsyncpa %s830, 1
    %832 = vsyncpa [#allocation4], 1
    %s833 = scalar_lea.sflag [#allocation4], 1
    %834 = vsyncpa %s833, 1

</llo_original>
